<compile_context>
chip_gen: v7x
topology: tpu7x:2x2x1
jax: 0.10.0
libtpu: 0.0.40
codegen_flags: <defaults>
</compile_context>

<pallas_src>
import functools

import jax
import jax.numpy as jnp
from jax.experimental import pallas as pl
from jax.experimental.pallas import tpu as pltpu


_LANES = 128
_SUBLANES = 8
_MAX_BLOCK_ROWS = 1024   # ~0.5 MiB f32 per logits block; sized against v5e's
                         # 16 MiB scoped-VMEM default and v7x's 64 MiB physical
                         # VMEM (do NOT re-derive this from v6e's 128 MiB).
_NUM_CORES = 2           # leading "parallel" grid axis: both TCs on v7x,
                         # sequential (and harmless) on v5e/v6e.


def _round_up(x, m):
    return ((x + m - 1) // m) * m


def _pad_lane_dense(x, n_blocks, block_rows):
    """Flatten to 1-D (native dtype, no host cast), zero-pad, view lane-dense."""
    # TODO(synk): in a real jitted training step fuse this reshape+pad into the
    # producing op so it does not cost a standalone HBM read+write pass.
    flat = x.reshape(-1)
    total = n_blocks * block_rows * _LANES
    flat = jnp.pad(flat, (0, total - flat.shape[0]))
    return flat.reshape(n_blocks * block_rows, _LANES)


# ---------------------------------------------------------------------------
# Fused encoder-output loss kernel (hot path of the demo loss_calculator)
# ---------------------------------------------------------------------------
def _encoder_loss_kernel(logits_ref, labels_ref, ppos_ref, tpos_ref,
                         out_ref, bce_acc, dist_acc,
                         *, n_logit_elems, logit_tile_elems):
    c = pl.program_id(0)                    # core / parallel axis
    t = pl.program_id(1)                    # reduction axis (this core's tiles)
    tiles_per_core = pl.num_programs(1)
    g = c * tiles_per_core + t              # global tile index
    tile_start = g * logit_tile_elems       # first logit element of this tile

    @pl.when(t == 0)
    def _init():
        bce_acc[...] = jnp.zeros_like(bce_acc)
        dist_acc[...] = jnp.zeros_like(dist_acc)

    # ---- BCE with logits (numerically stable): max(x,0) - x*y + log1p(e^-|x|)
    x = logits_ref[...].astype(jnp.float32)
    y = labels_ref[...].astype(jnp.float32)
    bce = jnp.maximum(x, 0.0) - x * y + jnp.log1p(jnp.exp(-jnp.abs(x)))

    def _accumulate_bce(vals):
        # Fold the (block_rows, 128) tile into the fixed (8, 128) accumulator
        # with a pure-VPU add tree; the cross-lane XLU sum runs once at the end.
        bce_acc[...] += jnp.sum(vals.reshape(-1, _SUBLANES, _LANES), axis=0)

    interior = tile_start + logit_tile_elems <= n_logit_elems

    @pl.when(interior)
    def _bce_interior():                    # no mask arithmetic on interior tiles
        _accumulate_bce(bce)

    @pl.when(jnp.logical_not(interior))
    def _bce_tail():
        # Only tiles overlapping the logits boundary pay for the iota mask;
        # zero-padded (x=0, y=0) slots would otherwise each add log(2).
        sub = jax.lax.broadcasted_iota(jnp.int32, bce.shape, 0)
        lane = jax.lax.broadcasted_iota(jnp.int32, bce.shape, 1)
        flat_idx = tile_start + sub * _LANES + lane
        _accumulate_bce(jnp.where(flat_idx < n_logit_elems, bce, 0.0))

    # ---- squared distance: zero padding of both position streams contributes
    # exactly 0 to d*d, so no mask is needed anywhere.
    d = ppos_ref[...].astype(jnp.float32) - tpos_ref[...].astype(jnp.float32)
    dist_acc[...] += jnp.sum((d * d).reshape(-1, _SUBLANES, _LANES), axis=0)

    @pl.when(t == tiles_per_core - 1)
    def _finalize():
        bce_sum = jnp.sum(bce_acc[...])
        dist_sum = jnp.sum(dist_acc[...])
        # Each core writes its own lane-dense (8, 128) output block:
        # row 0 carries this core's bce partial sum, row 1 its distance partial.
        sub8 = jax.lax.broadcasted_iota(jnp.int32, (_SUBLANES, _LANES), 0)
        out_ref[...] = jnp.where(sub8 == 0, bce_sum,
                                 jnp.where(sub8 == 1, dist_sum, 0.0))


def encoder_out_losses_pallas(logits, labels, ppos, tpos):
    assert logits.shape == labels.shape
    assert ppos.shape == tpos.shape
    B, Q, C = logits.shape
    P = ppos.shape[-1]
    n_logit_elems = B * Q * C
    n_pos_elems = B * Q * P
    n_pairs = B * Q

    logit_rows = _round_up(pl.cdiv(n_logit_elems, _LANES), _SUBLANES)
    pos_rows = _round_up(pl.cdiv(n_pos_elems, _LANES), _SUBLANES)

    # Size the grid off whichever stream is larger (capped block rows), then
    # give EACH stream its own block height so the small position arrays are
    # not zero-padded out to the logits element count.
    n_blocks_total = max(pl.cdiv(logit_rows, _MAX_BLOCK_ROWS),
                         pl.cdiv(pos_rows, _MAX_BLOCK_ROWS))
    tiles_per_core = pl.cdiv(n_blocks_total, _NUM_CORES)
    n_blocks = tiles_per_core * _NUM_CORES

    logit_block_rows = _round_up(pl.cdiv(logit_rows, n_blocks), _SUBLANES)
    pos_block_rows = _round_up(pl.cdiv(pos_rows, n_blocks), _SUBLANES)

    lg = _pad_lane_dense(logits, n_blocks, logit_block_rows)
    lb = _pad_lane_dense(labels, n_blocks, logit_block_rows)
    pp = _pad_lane_dense(ppos, n_blocks, pos_block_rows)
    tp = _pad_lane_dense(tpos, n_blocks, pos_block_rows)

    kernel = functools.partial(
        _encoder_loss_kernel,
        n_logit_elems=n_logit_elems,
        logit_tile_elems=logit_block_rows * _LANES)

    logit_spec = pl.BlockSpec((logit_block_rows, _LANES),
                              lambda c, t: (c * tiles_per_core + t, 0))
    pos_spec = pl.BlockSpec((pos_block_rows, _LANES),
                            lambda c, t: (c * tiles_per_core + t, 0))

    out = pl.pallas_call(
        kernel,
        out_shape=jax.ShapeDtypeStruct((_NUM_CORES * _SUBLANES, _LANES),
                                       jnp.float32),
        grid=(_NUM_CORES, tiles_per_core),
        in_specs=[logit_spec, logit_spec, pos_spec, pos_spec],
        out_specs=pl.BlockSpec((_SUBLANES, _LANES), lambda c, t: (c, 0)),
        scratch_shapes=[pltpu.VMEM((_SUBLANES, _LANES), jnp.float32),
                        pltpu.VMEM((_SUBLANES, _LANES), jnp.float32)],
        compiler_params=pltpu.CompilerParams(
            dimension_semantics=("parallel", "arbitrary")),
    )(lg, lb, pp, tp)

    partials = out.reshape(_NUM_CORES, _SUBLANES, _LANES)
    bce = jnp.sum(partials[:, 0, 0]) / n_logit_elems
    dist = jnp.sum(partials[:, 1, 0]) / n_pairs
    return bce, dist


# ---------------------------------------------------------------------------
# EncoderOutHandler (JAX port)
# ---------------------------------------------------------------------------
class EncoderOutHandler:
    def __init__(self, use_final_matches, encoder_out_loss_weight):
        self.use_final_matches = use_final_matches
        # registered buffer in the PyTorch module
        self.encoder_out_loss_weight = jnp.asarray(encoder_out_loss_weight,
                                                   jnp.float32)

    def forward(self, encoder_output, target_dict, loss_calculator,
                matcher=None, final_matched_indices=None):
        if final_matched_indices is not None:
            matched_indices = final_matched_indices
        else:
            # TODO(synk): HungarianMatcher is an external injected module; the
            # demo supplies a deterministic identity matcher instead.
            assert matcher is not None
            matched_indices = matcher(encoder_output, target_dict)
        encoder_out_loss_dict, _ = loss_calculator(
            encoder_output, target_dict, matched_indices)
        encoder_out_loss_dict = {f"encoder_out/{k}": v
                                 for k, v in encoder_out_loss_dict.items()}
        return encoder_out_loss_dict, matched_indices

    def apply_loss_weights(self, loss_dict):
        # Trace-time Python name mask over a handful of scalars; a dedicated
        # Pallas kernel (plus padding wrapper) would cost more than the work.
        out_dict = {}
        for name, loss in loss_dict.items():
            if "encoder_out" in name:
                out_dict[name] = (jnp.asarray(loss, jnp.float32)
                                  * self.encoder_out_loss_weight)
            else:
                out_dict[name] = loss
        return out_dict


# ---------------------------------------------------------------------------
# Demo matcher / loss_calculator (injected dependencies of the module)
# ---------------------------------------------------------------------------
def identity_matcher(encoder_output, target_dict):
    # Returns, per batch element, a (2, Q) array of [pred_idx, tgt_idx].
    B, Q, _ = encoder_output["pred_logits"].shape
    idx = jnp.arange(Q, dtype=jnp.int32)
    return [jnp.stack([idx, idx]) for _ in range(B)]


def simple_loss_calculator(encoder_output, target_dict, matched_indices,
                           gather=False):
    # On the identity-matcher / final-matched-indices path the gather is a
    # no-op, so skip the four take_along_axis HBM round-trips.
    logits = encoder_output["pred_logits"]
    labels = target_dict["labels"]
    ppos = encoder_output["pred_positions"]
    tpos = target_dict["positions"]
    if gather:
        pred_idx = jnp.stack([m[0] for m in matched_indices])  # (B, Q)
        tgt_idx = jnp.stack([m[1] for m in matched_indices])   # (B, Q)
        logits = jnp.take_along_axis(logits, pred_idx[..., None], axis=1)
        labels = jnp.take_along_axis(labels, tgt_idx[..., None], axis=1)
        ppos = jnp.take_along_axis(ppos, pred_idx[..., None], axis=1)
        tpos = jnp.take_along_axis(tpos, tgt_idx[..., None], axis=1)
    bce, dist = encoder_out_losses_pallas(logits, labels, ppos, tpos)
    return {"loss_bce": bce, "loss_distance": dist}, None


# ---------------------------------------------------------------------------
# Main
# ---------------------------------------------------------------------------
if __name__ == "__main__":
    B, Q, C, P = 2, 8, 4, 2
    enc_w = 0.5

    key = jax.random.PRNGKey(0)
    k0, k1, k2, k3 = jax.random.split(key, 4)

    encoder_output = {
        "pred_logits": jax.random.normal(k0, (B, Q, C), jnp.float32),
        "pred_positions": jax.random.uniform(k1, (B, Q, P), jnp.float32),
    }
    labels = jax.nn.one_hot(
        jax.random.randint(k2, (B, Q), 0, C), C, dtype=jnp.float32)
    target_dict = {
        "labels": labels,
        "positions": jax.random.uniform(k3, (B, Q, P), jnp.float32),
    }

    handler = EncoderOutHandler(use_final_matches=False,
                                encoder_out_loss_weight=enc_w)

    encoder_out_loss_dict, matched_indices = handler.forward(
        encoder_output, target_dict,
        loss_calculator=simple_loss_calculator, matcher=identity_matcher)

    # add a non-encoder ("main") loss to exercise the pass-through branch
    full_loss_dict = dict(encoder_out_loss_dict)
    full_loss_dict["loss_bce"] = jnp.asarray(0.7, jnp.float32)

    weighted = handler.apply_loss_weights(full_loss_dict)
    jax.block_until_ready(list(weighted.values()) + list(matched_indices))

    # -------- pure-JAX reference check --------
    x = encoder_output["pred_logits"]
    y = target_dict["labels"]
    ref_bce = jnp.mean(jnp.maximum(x, 0.0) - x * y
                       + jnp.log1p(jnp.exp(-jnp.abs(x))))
    d = encoder_output["pred_positions"] - target_dict["positions"]
    ref_dist = jnp.mean(jnp.sum(d * d, axis=-1))

    assert jnp.allclose(encoder_out_loss_dict["encoder_out/loss_bce"],
                        ref_bce, atol=1e-5)
    assert jnp.allclose(encoder_out_loss_dict["encoder_out/loss_distance"],
                        ref_dist, atol=1e-5)
    assert jnp.allclose(weighted["encoder_out/loss_bce"], ref_bce * enc_w,
                        atol=1e-5)
    assert jnp.allclose(weighted["encoder_out/loss_distance"],
                        ref_dist * enc_w, atol=1e-5)
    assert jnp.allclose(weighted["loss_bce"], 0.7, atol=1e-6)
    assert len(matched_indices) == B

    print("KERNEL_OK")
</pallas_src>

<mosaic_0001>
module attributes {stable_mosaic.version = 11 : i64} {
  func.func @_encoder_loss_kernel(%arg0: i32, %arg1: i32, %arg2: memref<8x128xf32, #tpu.memory_space<vmem>>, %arg3: memref<8x128xf32, #tpu.memory_space<vmem>>, %arg4: memref<8x128xf32, #tpu.memory_space<vmem>>, %arg5: memref<8x128xf32, #tpu.memory_space<vmem>>, %arg6: memref<8x128xf32, #tpu.memory_space<vmem>>, %arg7: memref<8x128xf32, #tpu.memory_space<vmem>>, %arg8: memref<8x128xf32, #tpu.memory_space<vmem>>) attributes {dimension_semantics = [#tpu.dimension_semantics<parallel>, #tpu.dimension_semantics<arbitrary>], iteration_bounds = array<i64: 2, 1>, scalar_prefetch = 0 : i64, scratch_operands = 2 : i64, tpu.core_type = #tpu.core_type<tc>, window_params = [{transform_indices = @transform_0, window_bounds = array<i64: 8, 128>}, {transform_indices = @transform_1, window_bounds = array<i64: 8, 128>}, {transform_indices = @transform_2, window_bounds = array<i64: 8, 128>}, {transform_indices = @transform_3, window_bounds = array<i64: 8, 128>}, {transform_indices = @transform_4, window_bounds = array<i64: 8, 128>}]} {
    %c1_i32 = arith.constant 1 : i32
    %0 = arith.muli %arg0, %c1_i32 : i32
    %1 = arith.addi %0, %arg1 : i32
    %c1024_i32 = arith.constant 1024 : i32
    %2 = arith.muli %1, %c1024_i32 : i32
    %c0_i32 = arith.constant 0 : i32
    %3 = arith.cmpi eq, %arg1, %c0_i32 : i32
    %4 = arith.extui %3 : i1 to i32
    %c0_i32_0 = arith.constant 0 : i32
    %5 = arith.cmpi ne, %4, %c0_i32_0 : i32
    scf.if %5 {
      %cst_19 = arith.constant 0.000000e+00 : f32
      %37 = vector.broadcast %cst_19 : f32 to vector<8x128xf32>
      %c0_20 = arith.constant 0 : index
      %c0_21 = arith.constant 0 : index
      %38 = vector.load %arg7[%c0_20, %c0_21] : memref<8x128xf32, #tpu.memory_space<vmem>>, vector<8x128xf32>
      tpu.vector_store %arg7[%c0_20, %c0_21], %37 {strides = array<i32>} : memref<8x128xf32, #tpu.memory_space<vmem>>, vector<8x128xf32>,
      %cst_22 = arith.constant 0.000000e+00 : f32
      %39 = vector.broadcast %cst_22 : f32 to vector<8x128xf32>
      %c0_23 = arith.constant 0 : index
      %c0_24 = arith.constant 0 : index
      %40 = vector.load %arg8[%c0_23, %c0_24] : memref<8x128xf32, #tpu.memory_space<vmem>>, vector<8x128xf32>
      tpu.vector_store %arg8[%c0_23, %c0_24], %39 {strides = array<i32>} : memref<8x128xf32, #tpu.memory_space<vmem>>, vector<8x128xf32>,
    } else {
    }
    %c0 = arith.constant 0 : index
    %c0_1 = arith.constant 0 : index
    %6 = vector.load %arg2[%c0, %c0_1] : memref<8x128xf32, #tpu.memory_space<vmem>>, vector<8x128xf32>
    %c0_2 = arith.constant 0 : index
    %c0_3 = arith.constant 0 : index
    %7 = vector.load %arg3[%c0_2, %c0_3] : memref<8x128xf32, #tpu.memory_space<vmem>>, vector<8x128xf32>
    %cst = arith.constant 0.000000e+00 : f32
    %8 = vector.broadcast %cst : f32 to vector<8x128xf32>
    %9 = arith.maximumf %6, %8 : vector<8x128xf32>
    %10 = arith.mulf %6, %7 : vector<8x128xf32>
    %11 = arith.subf %9, %10 : vector<8x128xf32>
    %12 = math.absf %6 : vector<8x128xf32>
    %cst_4 = arith.constant 0.000000e+00 : f32
    %13 = vector.broadcast %cst_4 : f32 to vector<8x128xf32>
    %14 = arith.subf %13, %12 : vector<8x128xf32>
    %15 = math.exp %14 : vector<8x128xf32>
    %16 = math.log1p %15 : vector<8x128xf32>
    %17 = arith.addf %11, %16 : vector<8x128xf32>
    %c1024_i32_5 = arith.constant 1024 : i32
    %18 = arith.addi %2, %c1024_i32_5 : i32
    %c64_i32 = arith.constant 64 : i32
    %19 = arith.cmpi sle, %18, %c64_i32 : i32
    %20 = arith.extui %19 : i1 to i32
    %c0_i32_6 = arith.constant 0 : i32
    %21 = arith.cmpi ne, %20, %c0_i32_6 : i32
    scf.if %21 {
      %c0_19 = arith.constant 0 : index
      %c0_20 = arith.constant 0 : index
      %37 = vector.load %arg7[%c0_19, %c0_20] : memref<8x128xf32, #tpu.memory_space<vmem>>, vector<8x128xf32>
      %38 = vector.shape_cast %17 : vector<8x128xf32> to vector<1x8x128xf32>
      %cst_21 = arith.constant dense<0.000000e+00> : vector<8x128xf32>
      %39 = vector.multi_reduction <add>, %38, %cst_21 [0] : vector<1x8x128xf32> to vector<8x128xf32>
      %40 = arith.addf %37, %39 : vector<8x128xf32>
      %c0_22 = arith.constant 0 : index
      %c0_23 = arith.constant 0 : index
      %41 = vector.load %arg7[%c0_22, %c0_23] : memref<8x128xf32, #tpu.memory_space<vmem>>, vector<8x128xf32>
      tpu.vector_store %arg7[%c0_22, %c0_23], %40 {strides = array<i32>} : memref<8x128xf32, #tpu.memory_space<vmem>>, vector<8x128xf32>,
    } else {
    }
    %true = arith.constant true
    %22 = arith.xori %19, %true : i1
    %23 = arith.extui %22 : i1 to i32
    %c0_i32_7 = arith.constant 0 : i32
    %24 = arith.cmpi ne, %23, %c0_i32_7 : i32
    scf.if %24 {
      %37 = tpu.iota {dimensions = array<i32: 0>} : vector<8x128xi32>
      %38 = tpu.iota {dimensions = array<i32: 1>} : vector<8x128xi32>
      %c128_i32 = arith.constant 128 : i32
      %39 = vector.broadcast %c128_i32 : i32 to vector<8x128xi32>
      %40 = arith.muli %37, %39 : vector<8x128xi32>
      %41 = vector.broadcast %2 : i32 to vector<8x128xi32>
      %42 = arith.addi %41, %40 : vector<8x128xi32>
      %43 = arith.addi %42, %38 : vector<8x128xi32>
      %c64_i32_19 = arith.constant 64 : i32
      %44 = vector.broadcast %c64_i32_19 : i32 to vector<8x128xi32>
      %45 = arith.cmpi slt, %43, %44 : vector<8x128xi32>
      %cst_20 = arith.constant 0.000000e+00 : f32
      %46 = vector.broadcast %cst_20 : f32 to vector<8x128xf32>
      %47 = arith.select %45, %17, %46 : vector<8x128xi1>, vector<8x128xf32>
      %c0_21 = arith.constant 0 : index
      %c0_22 = arith.constant 0 : index
      %48 = vector.load %arg7[%c0_21, %c0_22] : memref<8x128xf32, #tpu.memory_space<vmem>>, vector<8x128xf32>
      %49 = vector.shape_cast %47 : vector<8x128xf32> to vector<1x8x128xf32>
      %cst_23 = arith.constant dense<0.000000e+00> : vector<8x128xf32>
      %50 = vector.multi_reduction <add>, %49, %cst_23 [0] : vector<1x8x128xf32> to vector<8x128xf32>
      %51 = arith.addf %48, %50 : vector<8x128xf32>
      %c0_24 = arith.constant 0 : index
      %c0_25 = arith.constant 0 : index
      %52 = vector.load %arg7[%c0_24, %c0_25] : memref<8x128xf32, #tpu.memory_space<vmem>>, vector<8x128xf32>
      tpu.vector_store %arg7[%c0_24, %c0_25], %51 {strides = array<i32>} : memref<8x128xf32, #tpu.memory_space<vmem>>, vector<8x128xf32>,
    } else {
    }
    %c0_8 = arith.constant 0 : index
    %c0_9 = arith.constant 0 : index
    %25 = vector.load %arg4[%c0_8, %c0_9] : memref<8x128xf32, #tpu.memory_space<vmem>>, vector<8x128xf32>
    %c0_10 = arith.constant 0 : index
    %c0_11 = arith.constant 0 : index
    %26 = vector.load %arg5[%c0_10, %c0_11] : memref<8x128xf32, #tpu.memory_space<vmem>>, vector<8x128xf32>
    %27 = arith.subf %25, %26 : vector<8x128xf32>
    %c0_12 = arith.constant 0 : index
    %c0_13 = arith.constant 0 : index
    %28 = vector.load %arg8[%c0_12, %c0_13] : memref<8x128xf32, #tpu.memory_space<vmem>>, vector<8x128xf32>
    %29 = arith.mulf %27, %27 : vector<8x128xf32>
    %30 = vector.shape_cast %29 : vector<8x128xf32> to vector<1x8x128xf32>
    %cst_14 = arith.constant dense<0.000000e+00> : vector<8x128xf32>
    %31 = vector.multi_reduction <add>, %30, %cst_14 [0] : vector<1x8x128xf32> to vector<8x128xf32>
    %32 = arith.addf %28, %31 : vector<8x128xf32>
    %c0_15 = arith.constant 0 : index
    %c0_16 = arith.constant 0 : index
    %33 = vector.load %arg8[%c0_15, %c0_16] : memref<8x128xf32, #tpu.memory_space<vmem>>, vector<8x128xf32>
    tpu.vector_store %arg8[%c0_15, %c0_16], %32 {strides = array<i32>} : memref<8x128xf32, #tpu.memory_space<vmem>>, vector<8x128xf32>,
    %c0_i32_17 = arith.constant 0 : i32
    %34 = arith.cmpi eq, %arg1, %c0_i32_17 : i32
    %35 = arith.extui %34 : i1 to i32
    %c0_i32_18 = arith.constant 0 : i32
    %36 = arith.cmpi ne, %35, %c0_i32_18 : i32
    scf.if %36 {
      %c0_19 = arith.constant 0 : index
      %c0_20 = arith.constant 0 : index
      %37 = vector.load %arg7[%c0_19, %c0_20] : memref<8x128xf32, #tpu.memory_space<vmem>>, vector<8x128xf32>
      %38 = vector.shape_cast %37 : vector<8x128xf32> to vector<1x8x128xf32>
      %cst_21 = arith.constant dense<0.000000e+00> : vector<1xf32>
      %39 = vector.multi_reduction <add>, %38, %cst_21 [1, 2] : vector<1x8x128xf32> to vector<1xf32>
      %40 = vector.shape_cast %39 : vector<1xf32> to vector<1x1x1xf32>
      %41 = vector.extract %40[0, 0, 0] : f32 from vector<1x1x1xf32>
      %c0_22 = arith.constant 0 : index
      %c0_23 = arith.constant 0 : index
      %42 = vector.load %arg8[%c0_22, %c0_23] : memref<8x128xf32, #tpu.memory_space<vmem>>, vector<8x128xf32>
      %43 = vector.shape_cast %42 : vector<8x128xf32> to vector<1x8x128xf32>
      %cst_24 = arith.constant dense<0.000000e+00> : vector<1xf32>
      %44 = vector.multi_reduction <add>, %43, %cst_24 [1, 2] : vector<1x8x128xf32> to vector<1xf32>
      %45 = vector.shape_cast %44 : vector<1xf32> to vector<1x1x1xf32>
      %46 = vector.extract %45[0, 0, 0] : f32 from vector<1x1x1xf32>
      %47 = tpu.iota {dimensions = array<i32: 0>} : vector<8x128xi32>
      %c0_i32_25 = arith.constant 0 : i32
      %48 = vector.broadcast %c0_i32_25 : i32 to vector<8x128xi32>
      %49 = arith.cmpi eq, %47, %48 : vector<8x128xi32>
      %c1_i32_26 = arith.constant 1 : i32
      %50 = vector.broadcast %c1_i32_26 : i32 to vector<8x128xi32>
      %51 = arith.cmpi eq, %47, %50 : vector<8x128xi32>
      %cst_27 = arith.constant 0.000000e+00 : f32
      %52 = vector.broadcast %46 : f32 to vector<8x128xf32>
      %53 = vector.broadcast %cst_27 : f32 to vector<8x128xf32>
      %54 = arith.select %51, %52, %53 : vector<8x128xi1>, vector<8x128xf32>
      %55 = vector.broadcast %41 : f32 to vector<8x128xf32>
      %56 = arith.select %49, %55, %54 : vector<8x128xi1>, vector<8x128xf32>
      %c0_28 = arith.constant 0 : index
      %c0_29 = arith.constant 0 : index
      %57 = vector.load %arg6[%c0_28, %c0_29] : memref<8x128xf32, #tpu.memory_space<vmem>>, vector<8x128xf32>
      tpu.vector_store %arg6[%c0_28, %c0_29], %56 {strides = array<i32>} : memref<8x128xf32, #tpu.memory_space<vmem>>, vector<8x128xf32>,
    } else {
    }
    return
  }
  func.func @transform_0(%arg0: i32, %arg1: i32) -> (i32, i32) {
    %c1_i32 = arith.constant 1 : i32
    %0 = arith.muli %arg0, %c1_i32 : i32
    %1 = arith.addi %0, %arg1 : i32
    %c0_i32 = arith.constant 0 : i32
    %c0_i32_0 = arith.constant 0 : i32
    return %1, %c0_i32 : i32, i32
  }
  func.func @transform_1(%arg0: i32, %arg1: i32) -> (i32, i32) {
    %c1_i32 = arith.constant 1 : i32
    %0 = arith.muli %arg0, %c1_i32 : i32
    %1 = arith.addi %0, %arg1 : i32
    %c0_i32 = arith.constant 0 : i32
    %c0_i32_0 = arith.constant 0 : i32
    return %1, %c0_i32 : i32, i32
  }
  func.func @transform_2(%arg0: i32, %arg1: i32) -> (i32, i32) {
    %c1_i32 = arith.constant 1 : i32
    %0 = arith.muli %arg0, %c1_i32 : i32
    %1 = arith.addi %0, %arg1 : i32
    %c0_i32 = arith.constant 0 : i32
    %c0_i32_0 = arith.constant 0 : i32
    return %1, %c0_i32 : i32, i32
  }
  func.func @transform_3(%arg0: i32, %arg1: i32) -> (i32, i32) {
    %c1_i32 = arith.constant 1 : i32
    %0 = arith.muli %arg0, %c1_i32 : i32
    %1 = arith.addi %0, %arg1 : i32
    %c0_i32 = arith.constant 0 : i32
    %c0_i32_0 = arith.constant 0 : i32
    return %1, %c0_i32 : i32, i32
  }
  func.func @transform_4(%arg0: i32, %arg1: i32) -> (i32, i32) {
    %c0_i32 = arith.constant 0 : i32
    %c0_i32_0 = arith.constant 0 : i32
    return %arg0, %c0_i32 : i32, i32
  }
}

</mosaic_0001>

<llo_original>
// kernel: tpu_custom_call.1
$region0: #{tpu_custom_call.1}
  #allocation0 [shape = 'u32[]', space=smem, size = 0x4, offset = 0x4, fixed_abs, tag = 'smem constant byte address 0x4 - core index']
  #allocation1 [shape = 'u32[144,128]{1,0:T(1,128)}', space=vmem, size = 0x12000, scoped, tag = 'internal scratch']
  #allocation2 [shape = 'f32[8,128]{1,0:T(8,128)}', space=vmem, size = 0x1000, scoped, tag = 'scratch operand']
  #allocation3 [shape = 'f32[8,128]{1,0:T(8,128)}', space=vmem, size = 0x1000, scoped, tag = 'scratch operand']
  %s0 = inlined_call_operand.hbm [shape: f32[16,128], index: 0, kind: input, shape index: {}]
  %s1 = inlined_call_operand.hbm [shape: f32[16,128], index: 1, kind: input, shape index: {}]
  %s2 = inlined_call_operand.hbm [shape: f32[16,128], index: 2, kind: input, shape index: {}]
  %s3 = inlined_call_operand.hbm [shape: f32[16,128], index: 3, kind: input, shape index: {}]
  %s4 = inlined_call_operand.hbm [shape: f32[16,128], index: 4, kind: output, shape index: {}]
  %s5 = sld [smem:[#allocation0]]
  $region81: #{tpu_custom_call.1} parent=0
    _
  %s7 = ssub.s32 1, %s5
  %s8 = scalar_select 0, %s7, %s5
  $region1: #{tpu_custom_call.1} parent=0
    #allocation4 [shape = 'u8[8192]{0}', space=vmem, size = 0x2000, scoped, tag = 'input window, operand 0']
    #allocation5 [shape = 's32[2]{0}', space=sflag, size = 0x8, scoped, tag = 'scoped memory for tpu_custom_call.1']
    #allocation6 [shape = 's32[2]{0}', space=sflag, size = 0x8, scoped, tag = 'scoped memory for tpu_custom_call.1']
    #allocation7 [shape = 'u8[8192]{0}', space=vmem, size = 0x2000, scoped, tag = 'input window, operand 1']
    #allocation8 [shape = 's32[2]{0}', space=sflag, size = 0x8, scoped, tag = 'scoped memory for tpu_custom_call.1']
    #allocation9 [shape = 'u8[8192]{0}', space=vmem, size = 0x2000, scoped, tag = 'input window, operand 2']
    #allocation10 [shape = 'u8[8192]{0}', space=vmem, size = 0x2000, scoped, tag = 'input window, operand 3']
    #allocation11 [shape = 's32[2]{0}', space=sflag, size = 0x8, scoped, tag = 'scoped memory for tpu_custom_call.1']
    #allocation12 [shape = 'u8[8192]{0}', space=vmem, size = 0x2000, scoped, tag = 'output window, operand 0']
    %9 = vsyncpa [#allocation5], 0
    %s10 = scalar_lea.sflag [#allocation5], 1
    %11 = vsyncpa %s10, 0
    %12 = vsyncpa [#allocation8], 0
    %s13 = scalar_lea.sflag [#allocation8], 1
    %14 = vsyncpa %s13, 0
    %15 = vsyncpa [#allocation11], 0
    %s16 = scalar_lea.sflag [#allocation11], 1
    %17 = vsyncpa %s16, 0
    %18 = vsyncpa [#allocation6], 0
    %s19 = scalar_lea.sflag [#allocation6], 1
    %20 = vsyncpa %s19, 0
    loop: start=0, step=1, limit=4
    $region2: #{tpu_custom_call.1} parent=1 // loop_pre_header
      _
    $region3: #{tpu_custom_call.1} parent=1 // loop_header
      %s22 = sphi 0, %s26
      %p23 = scmp.ge.s32.totalorder %s22, 4
      %s29 = sphi 0, %s41
      %s30 = sphi 0, %s37
      %s31 = sphi 0, %s29
      %s32 = sphi 0, %s30
      %s33 = sphi 0, %s31
      %s34 = sphi 0, %s32
      %s46 = sphi 0, %s48
      %s49 = sphi 0, %s46
      %s50 = sphi 0, %s49
      %s66 = sphi 0, %s50
      %s74 = sphi 0, %s76
      %s77 = sphi 0, %s74
      %s78 = sphi 0, %s77
      %s94 = sphi 0, %s78
      %s102 = sphi 0, %s104
      %s105 = sphi 0, %s102
      %s106 = sphi 0, %s105
      %s122 = sphi 0, %s106
      %s130 = sphi 0, %s132
      %s133 = sphi 0, %s130
      %s134 = sphi 0, %s133
      %s150 = sphi 0, %s134
      %s156 = sphi 0, %s158
      %s159 = sphi 0, %s156
      %s160 = sphi 0, %s159
      %s176 = sphi 0, %s160
    $region4: #{tpu_custom_call.1} parent=1 // loop_header_branch
      %25 = sbr.rel (%p23) target = $region8
    $region5: #{tpu_custom_call.1} parent=1 // loop_body
      %s27 = ssub.s32 %s22, 1
      %s28 = ssub.s32 %s22, 2
      %s35 = sadd.s32 1, %s30
      %p36 = scmp.ge.s32.totalorder %s35, 1
      %s37 = scalar_select %p36, 0, %s35
      %s38 = sadd.s32 1, %s29
      %s39 = scalar_select %p36, %s38, %s29
      %p40 = scmp.ge.s32.totalorder %s39, 2
      %s41 = scalar_select %p40, 0, %s39
      %s42 = sadd.s32 %s29, %s30
      %s43 = sadd.s32 %s41, %s37
      %s44 = ssub.s32 %s42, %s43
      %p45 = scmp.eq.s32.totalorder %s44, 0
      %s47 = sadd.s32 %s46, 1
      %s48 = scalar_select %p45, %s46, %s47
      %p51 = pneg %p45
      %p52 = scmp.eq.s32.totalorder %s22, 1
      %p53 = por %p51, %p52
      %p54 = scmp.ne.s32.totalorder %s46, %s49
      %p55 = scmp.eq.s32.totalorder %s22, 0
      %p56 = por %p54, %p55
      %p57 = scmp.ne.s32.totalorder %s46, %s49
      %p58 = scmp.eq.s32.totalorder %s27, 1
      %p59 = por %p57, %p58
      %p60 = scmp.ne.s32.totalorder %s49, %s50
      %p61 = scmp.eq.s32.totalorder %s27, 0
      %p62 = por %p60, %p61
      %p63 = scmp.ne.s32.totalorder %s49, %s50
      %p64 = scmp.eq.s32.totalorder %s28, 1
      %p65 = por %p63, %p64
      %p67 = scmp.ne.s32.totalorder %s50, %s66
      %p68 = scmp.eq.s32.totalorder %s28, 0
      %p69 = por %p67, %p68
      %s70 = sadd.s32 %s29, %s30
      %s71 = sadd.s32 %s41, %s37
      %s72 = ssub.s32 %s70, %s71
      %p73 = scmp.eq.s32.totalorder %s72, 0
      %s75 = sadd.s32 %s74, 1
      %s76 = scalar_select %p73, %s74, %s75
      %p79 = pneg %p73
      %p80 = scmp.eq.s32.totalorder %s22, 1
      %p81 = por %p79, %p80
      %p82 = scmp.ne.s32.totalorder %s74, %s77
      %p83 = scmp.eq.s32.totalorder %s22, 0
      %p84 = por %p82, %p83
      %p85 = scmp.ne.s32.totalorder %s74, %s77
      %p86 = scmp.eq.s32.totalorder %s27, 1
      %p87 = por %p85, %p86
      %p88 = scmp.ne.s32.totalorder %s77, %s78
      %p89 = scmp.eq.s32.totalorder %s27, 0
      %p90 = por %p88, %p89
      %p91 = scmp.ne.s32.totalorder %s77, %s78
      %p92 = scmp.eq.s32.totalorder %s28, 1
      %p93 = por %p91, %p92
      %p95 = scmp.ne.s32.totalorder %s78, %s94
      %p96 = scmp.eq.s32.totalorder %s28, 0
      %p97 = por %p95, %p96
      %s98 = sadd.s32 %s29, %s30
      %s99 = sadd.s32 %s41, %s37
      %s100 = ssub.s32 %s98, %s99
      %p101 = scmp.eq.s32.totalorder %s100, 0
      %s103 = sadd.s32 %s102, 1
      %s104 = scalar_select %p101, %s102, %s103
      %p107 = pneg %p101
      %p108 = scmp.eq.s32.totalorder %s22, 1
      %p109 = por %p107, %p108
      %p110 = scmp.ne.s32.totalorder %s102, %s105
      %p111 = scmp.eq.s32.totalorder %s22, 0
      %p112 = por %p110, %p111
      %p113 = scmp.ne.s32.totalorder %s102, %s105
      %p114 = scmp.eq.s32.totalorder %s27, 1
      %p115 = por %p113, %p114
      %p116 = scmp.ne.s32.totalorder %s105, %s106
      %p117 = scmp.eq.s32.totalorder %s27, 0
      %p118 = por %p116, %p117
      %p119 = scmp.ne.s32.totalorder %s105, %s106
      %p120 = scmp.eq.s32.totalorder %s28, 1
      %p121 = por %p119, %p120
      %p123 = scmp.ne.s32.totalorder %s106, %s122
      %p124 = scmp.eq.s32.totalorder %s28, 0
      %p125 = por %p123, %p124
      %s126 = sadd.s32 %s29, %s30
      %s127 = sadd.s32 %s41, %s37
      %s128 = ssub.s32 %s126, %s127
      %p129 = scmp.eq.s32.totalorder %s128, 0
      %s131 = sadd.s32 %s130, 1
      %s132 = scalar_select %p129, %s130, %s131
      %p135 = pneg %p129
      %p136 = scmp.eq.s32.totalorder %s22, 1
      %p137 = por %p135, %p136
      %p138 = scmp.ne.s32.totalorder %s130, %s133
      %p139 = scmp.eq.s32.totalorder %s22, 0
      %p140 = por %p138, %p139
      %p141 = scmp.ne.s32.totalorder %s130, %s133
      %p142 = scmp.eq.s32.totalorder %s27, 1
      %p143 = por %p141, %p142
      %p144 = scmp.ne.s32.totalorder %s133, %s134
      %p145 = scmp.eq.s32.totalorder %s27, 0
      %p146 = por %p144, %p145
      %p147 = scmp.ne.s32.totalorder %s133, %s134
      %p148 = scmp.eq.s32.totalorder %s28, 1
      %p149 = por %p147, %p148
      %p151 = scmp.ne.s32.totalorder %s134, %s150
      %p152 = scmp.eq.s32.totalorder %s28, 0
      %p153 = por %p151, %p152
      %s154 = ssub.s32 %s29, %s41
      %p155 = scmp.eq.s32.totalorder %s154, 0
      %s157 = sadd.s32 %s156, 1
      %s158 = scalar_select %p155, %s156, %s157
      %p161 = pneg %p155
      %p162 = scmp.eq.s32.totalorder %s22, 1
      %p163 = por %p161, %p162
      %p164 = scmp.ne.s32.totalorder %s156, %s159
      %p165 = scmp.eq.s32.totalorder %s22, 0
      %p166 = por %p164, %p165
      %p167 = scmp.ne.s32.totalorder %s156, %s159
      %p168 = scmp.eq.s32.totalorder %s27, 1
      %p169 = por %p167, %p168
      %p170 = scmp.ne.s32.totalorder %s159, %s160
      %p171 = scmp.eq.s32.totalorder %s27, 0
      %p172 = por %p170, %p171
      %p173 = scmp.ne.s32.totalorder %s159, %s160
      %p174 = scmp.eq.s32.totalorder %s28, 1
      %p175 = por %p173, %p174
      %p177 = scmp.ne.s32.totalorder %s160, %s176
      %p178 = scmp.eq.s32.totalorder %s28, 0
      %p179 = por %p177, %p178
      %p180 = scmp.le.s32.totalorder 1, %s22
      %p181 = scmp.lt.s32.totalorder %s22, 3
      %p182 = pnand %p180, %p181
      %p183 = pneg %p182
      // Predicated region
      $region9: #{tpu_custom_call.1} parent=5 // pred_check
        _
      $region10: #{tpu_custom_call.1} parent=5 // pred_check_branch
        %185 = sbr.rel (%p182) target = $region12
      $region11: #{tpu_custom_call.1} parent=5 // pred_region
        %s186 = ssub.s32 %s22, 1
      $region12: #{tpu_custom_call.1} parent=5 // pred_fallthru
        _
      %p187 = scmp.lt.s32.totalorder %s22, 2
      // Predicated region
      $region13: #{tpu_custom_call.1} parent=5 // pred_check
        %p188 = pneg %p187
      $region14: #{tpu_custom_call.1} parent=5 // pred_check_branch
        %190 = sbr.rel (%p188) target = $region16
      $region15: #{tpu_custom_call.1} parent=5 // pred_region
        // Predicated region
        $region17: #{tpu_custom_call.1} parent=15 // pred_check
          %p191 = pneg %p56
        $region18: #{tpu_custom_call.1} parent=15 // pred_check_branch
          %193 = sbr.rel (%p191) target = $region20
        $region19: #{tpu_custom_call.1} parent=15 // pred_region
          %s194 = sand.u32 %s46, 1
          %s195 = scalar_lea.sflag [#allocation5], %s194
          %s196 = sand.u32 %s46, 1
          %s197 = smul.addr %s196, 8
          %s198 = scalar_lea.vmem [#allocation4], %s197
          %s199 = sadd.s32 %s29, %s30
          %s201 = ssub.s32 128, 128
          %202 = vsyncadd %s195, %s201
          %s203 = smul.addr %s199, 128
          %s204 = scalar_lea.hbm %s0, %s203
          %s206 = sshll.u32 %s198, 4
          %s207 = int_to_ptr.vmem [resolvable:$true] %s206
          %209 = dma.hbm_to_vmem [thread:$0]  %s204, 128, %s207, %s195
        $region20: #{tpu_custom_call.1} parent=15 // pred_fallthru
          _
        // Predicated region
        $region21: #{tpu_custom_call.1} parent=15 // pred_check
          %p210 = pneg %p84
        $region22: #{tpu_custom_call.1} parent=15 // pred_check_branch
          %212 = sbr.rel (%p210) target = $region24
        $region23: #{tpu_custom_call.1} parent=15 // pred_region
          %s213 = sand.u32 %s22, 1
          %s214 = scalar_lea.sflag [#allocation8], %s213
          %s215 = sand.u32 %s74, 1
          %s216 = smul.addr %s215, 8
          %s217 = scalar_lea.vmem [#allocation7], %s216
          %s218 = sadd.s32 %s29, %s30
          %s220 = ssub.s32 128, 128
          %221 = vsyncadd %s214, %s220
          %s222 = smul.addr %s218, 128
          %s223 = scalar_lea.hbm %s1, %s222
          %s225 = sshll.u32 %s217, 4
          %s226 = int_to_ptr.vmem [resolvable:$true] %s225
          %228 = dma.hbm_to_vmem [thread:$0]  %s223, 128, %s226, %s214
        $region24: #{tpu_custom_call.1} parent=15 // pred_fallthru
          _
        // Predicated region
        $region25: #{tpu_custom_call.1} parent=15 // pred_check
          %p229 = pneg %p112
        $region26: #{tpu_custom_call.1} parent=15 // pred_check_branch
          %231 = sbr.rel (%p229) target = $region28
        $region27: #{tpu_custom_call.1} parent=15 // pred_region
          %s232 = sand.u32 %s22, 1
          %s233 = scalar_lea.sflag [#allocation8], %s232
          %s234 = sand.u32 %s102, 1
          %s235 = smul.addr %s234, 8
          %s236 = scalar_lea.vmem [#allocation9], %s235
          %s237 = sadd.s32 %s29, %s30
          %s239 = ssub.s32 128, 128
          %240 = vsyncadd %s233, %s239
          %s241 = smul.addr %s237, 128
          %s242 = scalar_lea.hbm %s2, %s241
          %s244 = sshll.u32 %s236, 4
          %s245 = int_to_ptr.vmem [resolvable:$true] %s244
          %247 = dma.hbm_to_vmem [thread:$0]  %s242, 128, %s245, %s233
        $region28: #{tpu_custom_call.1} parent=15 // pred_fallthru
          _
        // Predicated region
        $region29: #{tpu_custom_call.1} parent=15 // pred_check
          %p248 = pneg %p140
        $region30: #{tpu_custom_call.1} parent=15 // pred_check_branch
          %250 = sbr.rel (%p248) target = $region32
        $region31: #{tpu_custom_call.1} parent=15 // pred_region
          %s251 = sand.u32 %s130, 1
          %s252 = scalar_lea.sflag [#allocation11], %s251
          %s253 = sand.u32 %s130, 1
          %s254 = smul.addr %s253, 8
          %s255 = scalar_lea.vmem [#allocation10], %s254
          %s256 = sadd.s32 %s29, %s30
          %s258 = ssub.s32 128, 128
          %259 = vsyncadd %s252, %s258
          %s260 = smul.addr %s256, 128
          %s261 = scalar_lea.hbm %s3, %s260
          %s263 = sshll.u32 %s255, 4
          %s264 = int_to_ptr.vmem [resolvable:$true] %s263
          %266 = dma.hbm_to_vmem [thread:$0]  %s261, 128, %s264, %s252
        $region32: #{tpu_custom_call.1} parent=15 // pred_fallthru
          _
      $region16: #{tpu_custom_call.1} parent=5 // pred_fallthru
        _
      %p267 = scmp.le.s32.totalorder 1, %s22
      %p268 = scmp.lt.s32.totalorder %s22, 3
      %p269 = pnand %p267, %p268
      %p270 = pneg %p269
      // Predicated region
      $region33: #{tpu_custom_call.1} parent=5 // pred_check
        _
      $region34: #{tpu_custom_call.1} parent=5 // pred_check_branch
        %272 = sbr.rel (%p269) target = $region36
      $region35: #{tpu_custom_call.1} parent=5 // pred_region
        %s273 = ssub.s32 %s22, 1
        %s274 = sand.u32 %s49, 1
        %s275 = scalar_lea.sflag [#allocation5], %s274
        %s276 = sand.u32 %s49, 1
        %s277 = smul.addr %s276, 8
        %s278 = scalar_lea.vmem [#allocation4], %s277
        // Predicated region
        $region37: #{tpu_custom_call.1} parent=35 // pred_check
          %p279 = pneg %p62
        $region38: #{tpu_custom_call.1} parent=35 // pred_check_branch
          %281 = sbr.rel (%p279) target = $region40
        $region39: #{tpu_custom_call.1} parent=35 // pred_region
          %282 = dma.done %s275, 128
        $region40: #{tpu_custom_call.1} parent=35 // pred_fallthru
          _
        %s283 = sand.u32 %s27, 1
        %s284 = scalar_lea.sflag [#allocation8], %s283
        %s285 = sand.u32 %s77, 1
        %s286 = smul.addr %s285, 8
        %s287 = scalar_lea.vmem [#allocation7], %s286
        // Predicated region
        $region41: #{tpu_custom_call.1} parent=35 // pred_check
          %p288 = pneg %p90
        $region42: #{tpu_custom_call.1} parent=35 // pred_check_branch
          %290 = sbr.rel (%p288) target = $region44
        $region43: #{tpu_custom_call.1} parent=35 // pred_region
          %291 = dma.done %s284, 128
        $region44: #{tpu_custom_call.1} parent=35 // pred_fallthru
          _
        %s292 = sand.u32 %s27, 1
        %s293 = scalar_lea.sflag [#allocation8], %s292
        %s294 = sand.u32 %s105, 1
        %s295 = smul.addr %s294, 8
        %s296 = scalar_lea.vmem [#allocation9], %s295
        // Predicated region
        $region45: #{tpu_custom_call.1} parent=35 // pred_check
          %p297 = pneg %p118
        $region46: #{tpu_custom_call.1} parent=35 // pred_check_branch
          %299 = sbr.rel (%p297) target = $region48
        $region47: #{tpu_custom_call.1} parent=35 // pred_region
          %300 = dma.done %s293, 128
        $region48: #{tpu_custom_call.1} parent=35 // pred_fallthru
          _
        %s301 = sand.u32 %s133, 1
        %s302 = scalar_lea.sflag [#allocation11], %s301
        %s303 = sand.u32 %s133, 1
        %s304 = smul.addr %s303, 8
        %s305 = scalar_lea.vmem [#allocation10], %s304
        // Predicated region
        $region49: #{tpu_custom_call.1} parent=35 // pred_check
          %p306 = pneg %p146
        $region50: #{tpu_custom_call.1} parent=35 // pred_check_branch
          %308 = sbr.rel (%p306) target = $region52
        $region51: #{tpu_custom_call.1} parent=35 // pred_region
          %309 = dma.done %s302, 128
        $region52: #{tpu_custom_call.1} parent=35 // pred_fallthru
          _
        %s310 = sand.u32 %s49, 1
        %s311 = scalar_lea.sflag [#allocation5], %s310
        %s312 = sand.u32 %s49, 1
        %s313 = smul.addr %s312, 8
        %s314 = scalar_lea.vmem [#allocation4], %s313
        %p315 = pneg %p62
        %p316 = pneg %p59
        %s317 = sand.u32 %s27, 1
        %s318 = scalar_lea.sflag [#allocation8], %s317
        %s319 = sand.u32 %s77, 1
        %s320 = smul.addr %s319, 8
        %s321 = scalar_lea.vmem [#allocation7], %s320
        %p322 = pneg %p90
        %p323 = pneg %p87
        %s324 = sand.u32 %s27, 1
        %s325 = scalar_lea.sflag [#allocation8], %s324
        %s326 = sand.u32 %s105, 1
        %s327 = smul.addr %s326, 8
        %s328 = scalar_lea.vmem [#allocation9], %s327
        %p329 = pneg %p118
        %p330 = pneg %p115
        %s331 = sand.u32 %s133, 1
        %s332 = scalar_lea.sflag [#allocation11], %s331
        %s333 = sand.u32 %s133, 1
        %s334 = smul.addr %s333, 8
        %s335 = scalar_lea.vmem [#allocation10], %s334
        %p336 = pneg %p146
        %p337 = pneg %p143
        %p338 = pneg %p172
        %p339 = pneg %p169
        %s340 = sand.u32 %s159, 1
        %s341 = scalar_lea.sflag [#allocation6], %s340
        %s342 = sand.u32 %s159, 1
        %s343 = smul.addr %s342, 8
        %s344 = scalar_lea.vmem [#allocation12], %s343
        %s345 = sadd.s32 %s31, %s32
        %s346 = sadd.s32 %s31, %s32
        %s347 = sadd.s32 %s31, %s32
        %s348 = sadd.s32 %s31, %s32
        %s349 = sadd.s32 %s31, %s32
        %s350 = smul.u32 %s349, 1024
        %p351 = scmp.eq.s32.totalorder %s32, 0
        // Predicated region
        $region53: #{tpu_custom_call.1} parent=35 // pred_check
          %p352 = pneg %p351
        $region54: #{tpu_custom_call.1} parent=35 // pred_check_branch
          %354 = sbr.rel (%p352) target = $region56
        $region55: #{tpu_custom_call.1} parent=35 // pred_region
          %355 = vst [vmem:[#allocation2] sm:$0xff] 0.0
          %356 = vst [vmem:[#allocation3] sm:$0xff] 0.0
        $region56: #{tpu_custom_call.1} parent=35 // pred_fallthru
          _
        %v357 = vld [vmem:[%s278] sm:$0xff]
        %v358 = vld [vmem:[%s287] sm:$0xff]
        %v359 = vmax.f32 %v357, 0.0
        %v360 = vmul.f32 %v357, %v358
        %v361 = vsub.f32 %v359, %v360
        %v362 = vand.u32 2147483647, %v357
        %v363 = vsub.f32 0.0, %v362
        %v364 = vmul.f32 %v363, 1.442695
        %v365 = vpow.pop %v364
        %v366 = vadd.f32 %v365, 1.0
        %v367 = vlog2.pop %v366
        %v368 = vmul.f32 %v367, 0.6931472
        %v369 = vmul.f32 -0.5, %v365
        %v370 = vadd.f32 %v369, 1.0
        %v371 = vmul.f32 %v370, %v365
        %v372 = vand.u32 2147483647, %v365
        %vm373 = vcmp.lt.f32.partialorder %v372, 0.0004427343
        %v374 = vsel %vm373, %v371, %v368
        %v375 = vadd.f32 %v361, %v374
        %s376 = sadd.s32 %s350, 1024
        %p377 = scmp.le.s32.totalorder %s376, 64
        // Predicated region
        $region57: #{tpu_custom_call.1} parent=35 // pred_check
          %p378 = pneg %p377
        $region58: #{tpu_custom_call.1} parent=35 // pred_check_branch
          %380 = sbr.rel (%p378) target = $region60
        $region59: #{tpu_custom_call.1} parent=35 // pred_region
          %v381 = vld [vmem:[#allocation2] sm:$0xff]
          %v382 = vadd.f32 %v375, 0.0
          %v383 = vadd.f32 %v381, %v382
          %384 = vst [vmem:[#allocation2] sm:$0xff] %v383
        $region60: #{tpu_custom_call.1} parent=35 // pred_fallthru
          _
        %p385 = scmp.gt.s32.totalorder %s376, 64
        // Predicated region
        $region61: #{tpu_custom_call.1} parent=35 // pred_check
          %p386 = pneg %p385
        $region62: #{tpu_custom_call.1} parent=35 // pred_check_branch
          %388 = sbr.rel (%p386) target = $region64
        $region63: #{tpu_custom_call.1} parent=35 // pred_region
          %v389 = vlaneseq
          %v390 = vshrl.u32 %v389, 7
          %v391 = vlaneseq
          %v392 = vand.u32 %v391, 127
          %v393 = vmul.u32 %v390, 128
          %v394 = vstv %s350
          %v395 = vadd.s32 %v394, %v393
          %v396 = vadd.s32 %v395, %v392
          %vm397 = vcmp.lt.s32.totalorder %v396, 64
          %v398 = vsel %vm397, %v375, 0.0
          %v399 = vld [vmem:[#allocation2] sm:$0xff]
          %v400 = vadd.f32 %v398, 0.0
          %v401 = vadd.f32 %v399, %v400
          %402 = vst [vmem:[#allocation2] sm:$0xff] %v401
        $region64: #{tpu_custom_call.1} parent=35 // pred_fallthru
          _
        %v403 = vld [vmem:[%s296] sm:$0xff]
        %v404 = vld [vmem:[%s305] sm:$0xff]
        %v405 = vsub.f32 %v403, %v404
        %v406 = vld [vmem:[#allocation3] sm:$0xff]
        %v407 = vmul.f32 %v405, %v405
        %v408 = vadd.f32 %v407, 0.0
        %v409 = vadd.f32 %v406, %v408
        %410 = vst [vmem:[#allocation3] sm:$0xff] %v409
        // Predicated region
        $region65: #{tpu_custom_call.1} parent=35 // pred_check
          %p411 = pneg %p351
        $region66: #{tpu_custom_call.1} parent=35 // pred_check_branch
          %413 = sbr.rel (%p411) target = $region68
        $region67: #{tpu_custom_call.1} parent=35 // pred_region
          %v414 = vld [vmem:[#allocation2] sm:$0xff]
          %415 = vadd.xlane.f32.xlu0 %v414
          %v416 = vpop.xlane.xlu0 %415
          %v417 = vrot.slane %v416, 4
          %v418 = vadd.f32 %v416, %v417
          %v419 = vrot.slane %v418, 2
          %v420 = vadd.f32 %v418, %v419
          %v421 = vrot.slane %v420, 1
          %v422 = vadd.f32 %v420, %v421
          %s423 = vtos %v422
          %v424 = vld [vmem:[#allocation3] sm:$0xff]
          %425 = vadd.xlane.f32.xlu0 %v424
          %v426 = vpop.xlane.xlu0 %425
          %v427 = vrot.slane %v426, 4
          %v428 = vadd.f32 %v426, %v427
          %v429 = vrot.slane %v428, 2
          %v430 = vadd.f32 %v428, %v429
          %v431 = vrot.slane %v430, 1
          %v432 = vadd.f32 %v430, %v431
          %s433 = vtos %v432
          %v434 = vlaneseq
          %v435 = vshrl.u32 %v434, 7
          %vm436 = vcmp.eq.s32.totalorder %v435, 0
          %vm437 = vcmp.eq.s32.totalorder %v435, 1
          %v438 = vstv %s433
          %v439 = vsel %vm437, %v438, 0.0
          %v440 = vstv %s423
          %v441 = vsel %vm436, %v440, %v439
          %442 = vst [vmem:[%s344] sm:$0xff] %v441
        $region68: #{tpu_custom_call.1} parent=35 // pred_fallthru
          _
        %s443 = sand.u32 %s159, 1
        %s444 = scalar_lea.sflag [#allocation6], %s443
        %s445 = sand.u32 %s159, 1
        %s446 = smul.addr %s445, 8
        %s447 = scalar_lea.vmem [#allocation12], %s446
        // Predicated region
        $region69: #{tpu_custom_call.1} parent=35 // pred_check
          %p448 = pneg %p169
        $region70: #{tpu_custom_call.1} parent=35 // pred_check_branch
          %450 = sbr.rel (%p448) target = $region72
        $region71: #{tpu_custom_call.1} parent=35 // pred_region
          %s452 = ssub.s32 128, 128
          %453 = vsyncadd %s444, %s452
          %s454 = smul.addr %s31, 128
          %s455 = scalar_lea.hbm %s4, %s454
          %s457 = sshll.u32 %s447, 4
          %s458 = int_to_ptr.vmem [resolvable:$true] %s457
          %460 = dma.vmem_to_hbm [thread:$0]  %s458, 128, %s455, %s444
        $region72: #{tpu_custom_call.1} parent=35 // pred_fallthru
          _
      $region36: #{tpu_custom_call.1} parent=5 // pred_fallthru
        _
      %p461 = scmp.le.s32.totalorder 2, %s22
      // Predicated region
      $region73: #{tpu_custom_call.1} parent=5 // pred_check
        %p462 = pneg %p461
      $region74: #{tpu_custom_call.1} parent=5 // pred_check_branch
        %464 = sbr.rel (%p462) target = $region76
      $region75: #{tpu_custom_call.1} parent=5 // pred_region
        %s465 = ssub.s32 %s22, 2
        // Predicated region
        $region77: #{tpu_custom_call.1} parent=75 // pred_check
          %p466 = pneg %p175
        $region78: #{tpu_custom_call.1} parent=75 // pred_check_branch
          %468 = sbr.rel (%p466) target = $region80
        $region79: #{tpu_custom_call.1} parent=75 // pred_region
          %s469 = sand.u32 %s160, 1
          %s470 = scalar_lea.sflag [#allocation6], %s469
          %s471 = sand.u32 %s160, 1
          %s472 = smul.addr %s471, 8
          %s473 = scalar_lea.vmem [#allocation12], %s472
          %474 = dma.done %s470, 128
        $region80: #{tpu_custom_call.1} parent=75 // pred_fallthru
          _
      $region76: #{tpu_custom_call.1} parent=5 // pred_fallthru
        _
    $region6: #{tpu_custom_call.1} parent=1 // loop_footer
      %s26 = sadd.s32 1, %s22
    $region7: #{tpu_custom_call.1} parent=1 // loop_footer_branch
      %21 = sbr.rel target = $region3
    $region8: #{tpu_custom_call.1} parent=1 // loop_exit
      _
    %475 = vsyncpa [#allocation5], 1
    %s476 = scalar_lea.sflag [#allocation5], 1
    %477 = vsyncpa %s476, 1
    %478 = vsyncpa [#allocation8], 1
    %s479 = scalar_lea.sflag [#allocation8], 1
    %480 = vsyncpa %s479, 1
    %481 = vsyncpa [#allocation11], 1
    %s482 = scalar_lea.sflag [#allocation11], 1
    %483 = vsyncpa %s482, 1
    %484 = vsyncpa [#allocation6], 1
    %s485 = scalar_lea.sflag [#allocation6], 1
    %486 = vsyncpa %s485, 1

</llo_original>
